<compile_context>
chip_gen: v5e
topology: v5e:2x2
jax: 0.10.0
libtpu: 0.0.40
codegen_flags: <defaults>
</compile_context>

<pallas_src>
import functools

import jax
import jax.numpy as jnp
from jax.experimental import pallas as pl
from jax.experimental.pallas import tpu as pltpu

_MIN_LANE_COLS = 128                    # lane width (unmasked full vst)
_MAX_LANE_COLS = 4096                   # widest full-width slab considered
_PAD_COLS = 1024                        # cols used on the (rare) pad fallback
_TARGET_BLOCK_BYTES = 4 * 1024 * 1024   # ~4 MiB per buffer
_VMEM_LIMIT_BYTES = 32 * 1024 * 1024    # explicit; > v5e's 16 MiB default,
                                        # <= v7x's 64 MiB physical


def _mask_sigmoid_kernel(mask_ref, out_ref, *, scale: float):
    # sigmoid(x) * scale == 0.5*scale*tanh(0.5*x) + 0.5*scale  (exact identity)
    # -> one EUP op (tanh); the affine part runs on the VPU (free filler).
    x = mask_ref[...].astype(jnp.float32)
    half_scale = jnp.float32(0.5 * scale)
    y = half_scale * jnp.tanh(jnp.float32(0.5) * x) + half_scale
    out_ref[...] = y.astype(out_ref.dtype)


def _sublane_multiple(dtype) -> int:
    # Packed dtypes fill sublanes in groups: f32 -> 8, bf16 -> 16, int8 -> 32.
    itemsize = jnp.dtype(dtype).itemsize
    return max(8, 32 // itemsize)


def _choose_cols(n_elem: int):
    """Widest full-width slab (multiple of 128, <= 4096) dividing n_elem."""
    for c in range(_MAX_LANE_COLS, _MIN_LANE_COLS - 1, -_MIN_LANE_COLS):
        if n_elem % c == 0:
            return c, False            # no pad needed
    return _PAD_COLS, True             # last resort: pad (extra HBM pass)


def _choose_tile_rows(rows: int, cols: int, itemsize: int, sub: int) -> int:
    """Row tile: ~4 MiB blocks; >= 2 grid steps for medium inputs (v7x)."""
    cap = max(sub, (_TARGET_BLOCK_BYTES // (cols * itemsize)) // sub * sub)
    if rows <= sub:
        return rows                    # single full-extent block
    if rows <= 2 * cap:
        # Split into (at least) two blocks so both v7x TensorCores get work;
        # last block may be ragged (OOB writes dropped by Pallas).
        half = -(-rows // 2)                       # cdiv(rows, 2)
        return min(cap, ((half + sub - 1) // sub) * sub)
    return cap


def mask_sigmoid(mask: jax.Array, scale: float = 2.0, *,
                 donate_input: bool = False) -> jax.Array:
    """Applies scaled sigmoid activation on mask (Pallas TPU kernel)."""
    if scale <= 0:
        raise ValueError("scale must be positive. Got scale={}".format(scale))

    orig_shape = mask.shape
    n_elem = mask.size
    if n_elem == 0:
        return mask
    dtype = mask.dtype
    itemsize = jnp.dtype(dtype).itemsize
    sub = _sublane_multiple(dtype)

    cols, needs_pad = _choose_cols(n_elem)
    if needs_pad:
        # TODO(synk): sizes not divisible by 128 pay one extra HBM pass (pad +
        # slice); all lane-friendly sizes take the free-reshape path above.
        rows = pl.cdiv(n_elem, cols)
        flat = jnp.pad(mask.reshape(-1), (0, rows * cols - n_elem))
        mask2d = flat.reshape(rows, cols)
    else:
        rows = n_elem // cols
        mask2d = mask.reshape(rows, cols)           # free (bitcast) reshape

    tile_rows = _choose_tile_rows(rows, cols, itemsize, sub)
    grid = (pl.cdiv(rows, tile_rows),)

    kernel = functools.partial(_mask_sigmoid_kernel, scale=float(scale))
    cost = pl.CostEstimate(
        flops=3 * n_elem,
        transcendentals=n_elem,
        bytes_accessed=2 * n_elem * itemsize,
    )

    out2d = pl.pallas_call(
        kernel,
        out_shape=jax.ShapeDtypeStruct((rows, cols), dtype),
        grid_spec=pltpu.PrefetchScalarGridSpec(
            num_scalar_prefetch=0,
            grid=grid,
            in_specs=[pl.BlockSpec((tile_rows, cols), lambda i: (i, 0))],
            out_specs=pl.BlockSpec((tile_rows, cols), lambda i: (i, 0)),
        ),
        compiler_params=pltpu.CompilerParams(
            dimension_semantics=("parallel",),
            vmem_limit_bytes=_VMEM_LIMIT_BYTES,
        ),
        cost_estimate=cost,
        input_output_aliases=({0: 0} if donate_input else {}),
    )(mask2d)

    if needs_pad:
        return out2d.reshape(-1)[:n_elem].reshape(orig_shape)
    return out2d.reshape(orig_shape)


class MaskSigmoid:
    """JAX/Pallas equivalent of tvdcn MaskSigmoid module."""

    def __init__(self, scale: float = 2.0):
        self.scale = float(scale)

    def __call__(self, mask: jax.Array) -> jax.Array:
        return mask_sigmoid(mask, self.scale)


if __name__ == "__main__":
    key = jax.random.PRNGKey(0)
    mod = MaskSigmoid(scale=2.0)

    # mask: [batch, mask_groups * kernel_area, H_out, W_out] -- lane-friendly
    # size (no-pad fast path).
    k1, k2 = jax.random.split(key)
    mask = jax.random.normal(k1, (2, 9, 16, 16), dtype=jnp.float32)
    out = jax.block_until_ready(mod(mask))
    ref = jax.nn.sigmoid(mask) * 2.0
    assert out.shape == mask.shape and out.dtype == mask.dtype
    assert jnp.allclose(out, ref, atol=1e-5, rtol=1e-5)

    # Odd spatial size -> exercises the pad fallback path.
    mask_odd = jax.random.normal(k2, (2, 9, 15, 15), dtype=jnp.float32)
    out_odd = jax.block_until_ready(mod(mask_odd))
    ref_odd = jax.nn.sigmoid(mask_odd) * 2.0
    assert out_odd.shape == mask_odd.shape
    assert jnp.allclose(out_odd, ref_odd, atol=1e-5, rtol=1e-5)

    print("KERNEL_OK")
</pallas_src>

<mosaic_0001>
module attributes {stable_mosaic.version = 11 : i64} {
  func.func @_mask_sigmoid_kernel(%arg0: i32, %arg1: memref<2x2304xf32, #tpu.memory_space<vmem>>, %arg2: memref<2x2304xf32, #tpu.memory_space<vmem>>) attributes {dimension_semantics = [#tpu.dimension_semantics<parallel>], iteration_bounds = array<i64: 1>, scalar_prefetch = 0 : i64, scratch_operands = 0 : i64, tpu.core_type = #tpu.core_type<tc>, window_params = [{transform_indices = @transform_0, window_bounds = array<i64: 2, 2304>}, {transform_indices = @transform_1, window_bounds = array<i64: 2, 2304>}]} {
    %c0 = arith.constant 0 : index
    %c0_0 = arith.constant 0 : index
    %0 = vector.load %arg1[%c0, %c0_0] : memref<2x2304xf32, #tpu.memory_space<vmem>>, vector<2x2304xf32>
    %cst = arith.constant 5.000000e-01 : f32
    %1 = vector.broadcast %cst : f32 to vector<2x2304xf32>
    %2 = arith.mulf %1, %0 : vector<2x2304xf32>
    %3 = math.tanh %2 : vector<2x2304xf32>
    %cst_1 = arith.constant 1.000000e+00 : f32
    %4 = vector.broadcast %cst_1 : f32 to vector<2x2304xf32>
    %5 = arith.mulf %4, %3 : vector<2x2304xf32>
    %cst_2 = arith.constant 1.000000e+00 : f32
    %6 = vector.broadcast %cst_2 : f32 to vector<2x2304xf32>
    %7 = arith.addf %5, %6 : vector<2x2304xf32>
    %c0_3 = arith.constant 0 : index
    %c0_4 = arith.constant 0 : index
    %8 = vector.load %arg2[%c0_3, %c0_4] : memref<2x2304xf32, #tpu.memory_space<vmem>>, vector<2x2304xf32>
    tpu.vector_store %arg2[%c0_3, %c0_4], %7 {strides = array<i32>} : memref<2x2304xf32, #tpu.memory_space<vmem>>, vector<2x2304xf32>,
    return
  }
  func.func @transform_0(%arg0: i32) -> (i32, i32) {
    %c0_i32 = arith.constant 0 : i32
    %c0_i32_0 = arith.constant 0 : i32
    return %arg0, %c0_i32 : i32, i32
  }
  func.func @transform_1(%arg0: i32) -> (i32, i32) {
    %c0_i32 = arith.constant 0 : i32
    %c0_i32_0 = arith.constant 0 : i32
    return %arg0, %c0_i32 : i32, i32
  }
}

</mosaic_0001>

<llo_original>
// kernel: tpu_custom_call.1
$region0: #{tpu_custom_call.1}
  #allocation0 [shape = 'u32[]', space=smem, size = 0x4, offset = 0x4, fixed_abs, tag = 'smem constant byte address 0x4 - core index']
  #allocation1 [shape = 'u32[72,128]{1,0:T(1,128)}', space=vmem, size = 0x9000, scoped, tag = 'internal scratch']
  %s0 = inlined_call_operand.hbm [shape: f32[2,2304], index: 0, kind: input, shape index: {}]
  %s1 = inlined_call_operand.hbm [shape: f32[2,2304], index: 1, kind: output, shape index: {}]
  %s2 = sld [smem:[#allocation0]]
  $region18: #{tpu_custom_call.1} parent=0
    _
  %s4 = ssub.s32 1, %s2
  %s5 = scalar_select 0, %s4, %s2
  $region1: #{tpu_custom_call.1} parent=0
    #allocation2 [shape = 'u8[18432]{0}', space=vmem, size = 0x4800, scoped, tag = 'input window, operand 0, single buffered']
    #allocation3 [shape = 's32[1]{0}', space=sflag, size = 0x4, scoped, tag = 'scoped memory for tpu_custom_call.1']
    #allocation4 [shape = 's32[1]{0}', space=sflag, size = 0x4, scoped, tag = 'scoped memory for tpu_custom_call.1']
    #allocation5 [shape = 'u8[18432]{0}', space=vmem, size = 0x4800, scoped, tag = 'output window, operand 0, single buffered']
    %6 = vsyncpa [#allocation3], 0
    %7 = vsyncpa [#allocation4], 0
    // Predicated region
    $region2: #{tpu_custom_call.1} parent=1 // pred_check
      _
    $region3: #{tpu_custom_call.1} parent=1 // pred_check_branch
      %9 = sbr.rel (0) target = $region5
    $region4: #{tpu_custom_call.1} parent=1 // pred_region
      %11 = vsyncadd [#allocation3], 0
      %s13 = sshll.u32 %s0, 4
      %s14 = int_to_ptr.hbm [resolvable:$true] %s13
      %s15 = sshll.u32 [#allocation2], 4
      %s16 = int_to_ptr.vmem [resolvable:$true] %s15
      %18 = dma.hbm_to_vmem [thread:$0]  %s14, 576, %s16, [#allocation3]
    $region5: #{tpu_custom_call.1} parent=1 // pred_fallthru
      _
    // Predicated region
    $region6: #{tpu_custom_call.1} parent=1 // pred_check
      _
    $region7: #{tpu_custom_call.1} parent=1 // pred_check_branch
      %20 = sbr.rel (0) target = $region9
    $region8: #{tpu_custom_call.1} parent=1 // pred_region
      %22 = dma.done [#allocation3], 576
    $region9: #{tpu_custom_call.1} parent=1 // pred_fallthru
      _
    %v23 = vld [vmem:[#allocation2] sm:$0xff]
    %v24 = vld [vmem:[#allocation2 + $0x8] sm:$0xff]
    %v25 = vld [vmem:[#allocation2 + $0x10] sm:$0xff]
    %v26 = vld [vmem:[#allocation2 + $0x18] sm:$0xff]
    %v27 = vld [vmem:[#allocation2 + $0x20] sm:$0xf]
    %v28 = vmul.f32 %v23, 0.5
    %v29 = vmul.f32 %v24, 0.5
    %v30 = vmul.f32 %v25, 0.5
    %v31 = vmul.f32 %v26, 0.5
    %v32 = vmul.f32 %v27, 0.5
    %v33 = vtanh.pop %v28
    %v34 = vtanh.pop %v29
    %v35 = vtanh.pop %v30
    %v36 = vtanh.pop %v31
    %v37 = vtanh.pop %v32
    %v38 = vadd.f32 %v33, 1.0
    %v39 = vadd.f32 %v34, 1.0
    %v40 = vadd.f32 %v35, 1.0
    %v41 = vadd.f32 %v36, 1.0
    %v42 = vadd.f32 %v37, 1.0
    %43 = vst [vmem:[#allocation5] sm:$0xff] %v38
    %44 = vst [vmem:[#allocation5 + $0x8] sm:$0xff] %v39
    %45 = vst [vmem:[#allocation5 + $0x10] sm:$0xff] %v40
    %46 = vst [vmem:[#allocation5 + $0x18] sm:$0xff] %v41
    %47 = vst [vmem:[#allocation5 + $0x20] sm:$0xf] %v42
    // Predicated region
    $region10: #{tpu_custom_call.1} parent=1 // pred_check
      _
    $region11: #{tpu_custom_call.1} parent=1 // pred_check_branch
      %49 = sbr.rel (0) target = $region13
    $region12: #{tpu_custom_call.1} parent=1 // pred_region
      %51 = vsyncadd [#allocation4], 0
      %s53 = sshll.u32 [#allocation5], 4
      %s54 = int_to_ptr.vmem [resolvable:$true] %s53
      %s55 = sshll.u32 %s1, 4
      %s56 = int_to_ptr.hbm [resolvable:$true] %s55
      %58 = dma.vmem_to_hbm [thread:$0]  %s54, 576, %s56, [#allocation4]
    $region13: #{tpu_custom_call.1} parent=1 // pred_fallthru
      _
    // Predicated region
    $region14: #{tpu_custom_call.1} parent=1 // pred_check
      _
    $region15: #{tpu_custom_call.1} parent=1 // pred_check_branch
      %60 = sbr.rel (0) target = $region17
    $region16: #{tpu_custom_call.1} parent=1 // pred_region
      %62 = dma.done [#allocation4], 576
    $region17: #{tpu_custom_call.1} parent=1 // pred_fallthru
      _
    %63 = vsyncpa [#allocation3], 1
    %64 = vsyncpa [#allocation4], 1

</llo_original>
